<compile_context>
chip_gen: v7x
topology: tpu7x:2x2x1
jax: 0.10.0
libtpu: 0.0.40
codegen_flags: <defaults>
</compile_context>

<pallas_src>
import jax
import jax.numpy as jnp
from jax.experimental import pallas as pl
from jax.experimental.pallas import tpu as pltpu

LANE = 128
SUB = 8


def _round_up(n, m):
    return ((n + m - 1) // m) * m


def _multi_tensorcore_device():
    """Best-effort detection of >1 TensorCore per device (v4 / v5p / v7x)."""
    try:
        kind = jax.devices()[0].device_kind.lower()
    except Exception:
        return False
    if any(s in kind for s in ("lite", "v5e", "v6", "v2", "v3")):
        return False
    return any(s in kind for s in ("v4", "v5", "v7", "7x"))


# ---------------------------------------------------------------------------
# Kernel: 3 matmuls (l1, l2, folded dueling head), 2 ReLUs, all in VMEM.
#   x_ref   : (TB, obs)   f32   observations (cast to bf16 in-kernel)
#   w1_ref  : (obs, HP)   bf16  layer-1 weights (hidden padded to HP)
#   w2q_ref : (HP, HP+AP) bf16  [layer-2 weights | folded head weights]
#   b_ref   : (3, BW)     f32   rows: b1, b2, bq   (BW = max(HP, AP))
#   q_ref   : (TB, AP)    f32   q-values (AP == n_actions, no padding)
# ---------------------------------------------------------------------------
def _dueling_q_kernel(x_ref, w1_ref, w2q_ref, b_ref, q_ref):
    hp = w1_ref.shape[1]   # static
    ap = q_ref.shape[1]    # static

    xb = x_ref[...].astype(jnp.bfloat16)

    h1 = jnp.maximum(
        jnp.dot(xb, w1_ref[...], preferred_element_type=jnp.float32)
        + b_ref[0:1, :hp], 0.0)

    h2 = jnp.maximum(
        jnp.dot(h1.astype(jnp.bfloat16), w2q_ref[:, :hp],
                preferred_element_type=jnp.float32)
        + b_ref[1:2, :hp], 0.0)

    q = (jnp.dot(h2.astype(jnp.bfloat16), w2q_ref[:, hp:],
                 preferred_element_type=jnp.float32)
         + b_ref[2:3, :ap])

    q_ref[...] = q.astype(q_ref.dtype)


# ---------------------------------------------------------------------------
# Host-side weight prep: fold dueling combine, pad hidden to 128, cast to bf16.
# ---------------------------------------------------------------------------
def prepare_params(params, obs_size, n_actions):
    w1, b1, w2, b2, wv, bv, wa, ba = params
    hidden = w1.shape[1]

    # Fold: q = v + a - mean(a)  ==  h2 @ Wq + bq   (forward-exact)
    wq = wa + wv - jnp.mean(wa, axis=1, keepdims=True)       # (H, A)
    bq = ba + bv - jnp.mean(ba, axis=1, keepdims=True)       # (1, A)

    HP = _round_up(hidden, LANE)     # lane-aligned hidden width
    AP = n_actions                   # real action width (no output padding)
    BW = max(HP, AP)                 # bias slab width

    def pad2(a, r, c):
        return jnp.pad(a, ((0, r - a.shape[0]), (0, c - a.shape[1])))

    w1p = pad2(w1, obs_size, HP).astype(jnp.bfloat16)          # (obs, HP)
    w2q = jnp.concatenate([pad2(w2, HP, HP),
                           pad2(wq, HP, AP)],
                          axis=1).astype(jnp.bfloat16)          # (HP, HP+AP)
    b_all = jnp.concatenate([pad2(b1, 1, BW),
                             pad2(b2, 1, BW),
                             pad2(bq, 1, BW)], axis=0)          # (3, BW) f32
    return (w1p, w2q, b_all)


# ---------------------------------------------------------------------------
# Wrapper: gridless (fully VMEM-resident) for small batches; batch-parallel
# grid for large batches, with a generation-aware threshold / block size.
# ---------------------------------------------------------------------------
def dueling_ddqn_q(x, packed, n_actions, *, block_b=None):
    w1p, w2q, b_all = packed
    B, obs = x.shape
    HP = w1p.shape[1]
    AP = w2q.shape[1] - HP

    if block_b is not None:
        block_b = _round_up(int(block_b), SUB)
        use_grid = B > block_b
    elif _multi_tensorcore_device():
        # 2 TensorCores per device: split the batch across >=2 parallel steps.
        use_grid = B >= 512
        if use_grid:
            steps = max(2, pl.cdiv(B, 2048))
            block_b = _round_up(pl.cdiv(B, steps), SUB)
    else:
        # 1 TensorCore: per-step overhead dominates; stay gridless while the
        # working set (~1.6 KiB/row) comfortably fits scoped VMEM.
        use_grid = B > 4096
        if use_grid:
            block_b = 2048

    flops = 2 * B * (obs * HP + HP * HP + HP * AP)
    bytes_accessed = int(x.size * 4 + w1p.size * 2 + w2q.size * 2
                         + b_all.size * 4 + B * AP * 4)
    ce = pl.CostEstimate(flops=flops, transcendentals=0,
                         bytes_accessed=bytes_accessed)

    out_shape = jax.ShapeDtypeStruct((B, AP), jnp.float32)

    if not use_grid:
        # Single invocation, everything resident in VMEM; no pad / slice.
        vmem = pl.BlockSpec(memory_space=pltpu.MemorySpace.VMEM)
        return pl.pallas_call(
            _dueling_q_kernel,
            out_shape=out_shape,
            in_specs=[vmem, vmem, vmem, vmem],
            out_specs=vmem,
            cost_estimate=ce,
        )(x, w1p, w2q, b_all)

    # 1-D grid over batch; last block may be ragged (rows are independent,
    # out-of-range output rows are masked by Pallas).
    grid = (pl.cdiv(B, block_b),)
    return pl.pallas_call(
        _dueling_q_kernel,
        out_shape=out_shape,
        grid=grid,
        in_specs=[
            pl.BlockSpec((block_b, obs), lambda i: (i, 0)),
            pl.BlockSpec((obs, HP), lambda i: (0, 0)),
            pl.BlockSpec((HP, HP + AP), lambda i: (0, 0)),
            pl.BlockSpec(b_all.shape, lambda i: (0, 0)),
        ],
        out_specs=pl.BlockSpec((block_b, AP), lambda i: (i, 0)),
        compiler_params=pltpu.CompilerParams(
            dimension_semantics=("parallel",)),
        cost_estimate=ce,
    )(x, w1p, w2q, b_all)


# ---------------------------------------------------------------------------
# Init + pure-JAX reference (unfolded, unpadded, f32) for verification.
# ---------------------------------------------------------------------------
def init_params(key, obs_size, n_actions, hidden=50):
    def linear(k, fan_in, fan_out):
        k1, k2 = jax.random.split(k)
        bound = 1.0 / jnp.sqrt(fan_in)
        w = jax.random.uniform(k1, (fan_in, fan_out), jnp.float32, -bound, bound)
        b = jax.random.uniform(k2, (1, fan_out), jnp.float32, -bound, bound)
        return w, b

    k1, k2, k3, k4 = jax.random.split(key, 4)
    w1, b1 = linear(k1, obs_size, hidden)
    w2, b2 = linear(k2, hidden, hidden)
    wv, bv = linear(k3, hidden, 1)
    wa, ba = linear(k4, hidden, n_actions)
    return (w1, b1, w2, b2, wv, bv, wa, ba)


def reference_forward(x, params):
    w1, b1, w2, b2, wv, bv, wa, ba = params
    h = jnp.maximum(x @ w1 + b1, 0.0)
    h = jnp.maximum(h @ w2 + b2, 0.0)
    v = h @ wv + bv
    a = h @ wa + ba
    return v + a - jnp.mean(a, axis=1, keepdims=True)


if __name__ == "__main__":
    obs_size = 4
    n_actions = 5

    key = jax.random.PRNGKey(0)
    kp, kx1, kx2, kx3 = jax.random.split(key, 4)
    params = init_params(kp, obs_size, n_actions, hidden=50)
    packed = prepare_params(params, obs_size, n_actions)

    # bf16 matmul operands -> looser tolerance than the old f32 kernel.
    ATOL = RTOL = 2e-2

    # 1) Tiny inference batch -> gridless, fully VMEM-resident call.
    x = jax.random.normal(kx1, (2, obs_size), jnp.float32)
    q = jax.block_until_ready(dueling_ddqn_q(x, packed, n_actions))
    q_ref = reference_forward(x, params)
    assert q.shape == (2, n_actions)
    assert jnp.allclose(q, q_ref, atol=ATOL, rtol=RTOL)

    # 2) Training-sized batch -> policy picks grid (multi-TC) or gridless (1-TC).
    xb = jax.random.normal(kx2, (2048, obs_size), jnp.float32)
    qb = jax.block_until_ready(dueling_ddqn_q(xb, packed, n_actions))
    qb_ref = reference_forward(xb, params)
    assert qb.shape == (2048, n_actions)
    assert jnp.allclose(qb, qb_ref, atol=ATOL, rtol=RTOL)

    # 3) Forced grid path with a ragged last block (exercises edge masking).
    xr = jax.random.normal(kx3, (1000, obs_size), jnp.float32)
    qr = jax.block_until_ready(dueling_ddqn_q(xr, packed, n_actions, block_b=512))
    qr_ref = reference_forward(xr, params)
    assert qr.shape == (1000, n_actions)
    assert jnp.allclose(qr, qr_ref, atol=ATOL, rtol=RTOL)

    print("KERNEL_OK")
</pallas_src>

<mosaic_0001>
module attributes {stable_mosaic.version = 11 : i64} {
  func.func @_dueling_q_kernel(%arg0: memref<2x4xf32, #tpu.memory_space<vmem>>, %arg1: memref<4x128xbf16, #tpu.memory_space<vmem>>, %arg2: memref<128x133xbf16, #tpu.memory_space<vmem>>, %arg3: memref<3x128xf32, #tpu.memory_space<vmem>>, %arg4: memref<2x5xf32, #tpu.memory_space<vmem>>) attributes {dimension_semantics = [], scalar_prefetch = 0 : i64, scratch_operands = 0 : i64, tpu.core_type = #tpu.core_type<tc>} {
    %c0 = arith.constant 0 : index
    %c0_0 = arith.constant 0 : index
    %0 = vector.load %arg0[%c0, %c0_0] : memref<2x4xf32, #tpu.memory_space<vmem>>, vector<2x4xf32>
    %1 = arith.truncf %0 : vector<2x4xf32> to vector<2x4xbf16>
    %c0_1 = arith.constant 0 : index
    %c0_2 = arith.constant 0 : index
    %2 = vector.load %arg1[%c0_1, %c0_2] : memref<4x128xbf16, #tpu.memory_space<vmem>>, vector<4x128xbf16>
    %cst = arith.constant dense<0.000000e+00> : vector<2x128xf32>
    %3 = tpu.matmul %1, %2, %cst {dimension_numbers = #tpu.dot_dimension_numbers<[1], [0], [0], [1], [0, 0, 1, 1], [], []>} : vector<2x4xbf16>, vector<4x128xbf16>, vector<2x128xf32> -> vector<2x128xf32>
    %c0_3 = arith.constant 0 : index
    %c0_4 = arith.constant 0 : index
    %4 = vector.load %arg3[%c0_3, %c0_4] : memref<3x128xf32, #tpu.memory_space<vmem>>, vector<1x128xf32>
    %5 = vector.broadcast %4 : vector<1x128xf32> to vector<2x128xf32>
    %6 = arith.addf %3, %5 : vector<2x128xf32>
    %cst_5 = arith.constant 0.000000e+00 : f32
    %7 = vector.broadcast %cst_5 : f32 to vector<2x128xf32>
    %8 = arith.maximumf %6, %7 : vector<2x128xf32>
    %9 = arith.truncf %8 : vector<2x128xf32> to vector<2x128xbf16>
    %c0_6 = arith.constant 0 : index
    %c0_7 = arith.constant 0 : index
    %10 = vector.load %arg2[%c0_6, %c0_7] : memref<128x133xbf16, #tpu.memory_space<vmem>>, vector<128x128xbf16>
    %cst_8 = arith.constant dense<0.000000e+00> : vector<2x128xf32>
    %11 = tpu.matmul %9, %10, %cst_8 {dimension_numbers = #tpu.dot_dimension_numbers<[1], [0], [0], [1], [0, 0, 1, 1], [], []>} : vector<2x128xbf16>, vector<128x128xbf16>, vector<2x128xf32> -> vector<2x128xf32>
    %c1 = arith.constant 1 : index
    %c0_9 = arith.constant 0 : index
    %12 = vector.load %arg3[%c1, %c0_9] : memref<3x128xf32, #tpu.memory_space<vmem>>, vector<1x128xf32>
    %13 = vector.broadcast %12 : vector<1x128xf32> to vector<2x128xf32>
    %14 = arith.addf %11, %13 : vector<2x128xf32>
    %cst_10 = arith.constant 0.000000e+00 : f32
    %15 = vector.broadcast %cst_10 : f32 to vector<2x128xf32>
    %16 = arith.maximumf %14, %15 : vector<2x128xf32>
    %17 = arith.truncf %16 : vector<2x128xf32> to vector<2x128xbf16>
    %c0_11 = arith.constant 0 : index
    %c128 = arith.constant 128 : index
    %18 = vector.load %arg2[%c0_11, %c128] : memref<128x133xbf16, #tpu.memory_space<vmem>>, vector<128x5xbf16>
    %cst_12 = arith.constant dense<0.000000e+00> : vector<2x5xf32>
    %19 = tpu.matmul %17, %18, %cst_12 {dimension_numbers = #tpu.dot_dimension_numbers<[1], [0], [0], [1], [0, 0, 1, 1], [], []>} : vector<2x128xbf16>, vector<128x5xbf16>, vector<2x5xf32> -> vector<2x5xf32>
    %c2 = arith.constant 2 : index
    %c0_13 = arith.constant 0 : index
    %20 = vector.load %arg3[%c2, %c0_13] : memref<3x128xf32, #tpu.memory_space<vmem>>, vector<1x5xf32>
    %21 = vector.broadcast %20 : vector<1x5xf32> to vector<2x5xf32>
    %22 = arith.addf %19, %21 : vector<2x5xf32>
    %c0_14 = arith.constant 0 : index
    %c0_15 = arith.constant 0 : index
    %23 = vector.load %arg4[%c0_14, %c0_15] : memref<2x5xf32, #tpu.memory_space<vmem>>, vector<2x5xf32>
    tpu.vector_store %arg4[%c0_14, %c0_15], %22 {strides = array<i32>} : memref<2x5xf32, #tpu.memory_space<vmem>>, vector<2x5xf32>,
    return
  }
}

</mosaic_0001>

<llo_original>
// kernel: tpu_custom_call.1
$region0: #{tpu_custom_call.1}
  #allocation0 [shape = 'u32[]', space=smem, size = 0x4, offset = 0x4, fixed_abs, tag = 'smem constant byte address 0x4 - core index']
  #allocation1 [shape = 'u32[144,128]{1,0:T(1,128)}', space=vmem, size = 0x12000, scoped, tag = 'internal scratch']
  %s0 = inlined_call_operand.vmem [shape: f32[2,4], index: 0, kind: input, shape index: {}]
  %s1 = inlined_call_operand.vmem [shape: bf16[4,128], index: 1, kind: input, shape index: {}]
  %s2 = inlined_call_operand.vmem [shape: bf16[128,133], index: 2, kind: input, shape index: {}]
  %s3 = inlined_call_operand.vmem [shape: f32[3,128], index: 3, kind: input, shape index: {}]
  %s4 = inlined_call_operand.hbm [shape: f32[2,5], index: 4, kind: output, shape index: {}]
  %s5 = sld [smem:[#allocation0]]
  $region26: #{tpu_custom_call.1} parent=0
    _
  %s7 = ssub.s32 1, %s5
  %s8 = scalar_select 0, %s7, %s5
  $region1: #{tpu_custom_call.1} parent=0
    #allocation2 [shape = 'u8[1024]{0}', space=vmem, size = 0x400, scoped, tag = 'output window, operand 0, single buffered']
    #allocation3 [shape = 's32[1]{0}', space=sflag, size = 0x4, scoped, tag = 'scoped memory for tpu_custom_call.1']
    %9 = vsyncpa [#allocation3], 0
    // Predicated region
    $region2: #{tpu_custom_call.1} parent=1 // pred_check
      _
    $region3: #{tpu_custom_call.1} parent=1 // pred_check_branch
      %11 = sbr.rel (0) target = $region5
    $region4: #{tpu_custom_call.1} parent=1 // pred_region
      _
    $region5: #{tpu_custom_call.1} parent=1 // pred_fallthru
      _
    // Predicated region
    $region6: #{tpu_custom_call.1} parent=1 // pred_check
      _
    $region7: #{tpu_custom_call.1} parent=1 // pred_check_branch
      %13 = sbr.rel (0) target = $region9
    $region8: #{tpu_custom_call.1} parent=1 // pred_region
      _
    $region9: #{tpu_custom_call.1} parent=1 // pred_fallthru
      _
    // Predicated region
    $region10: #{tpu_custom_call.1} parent=1 // pred_check
      _
    $region11: #{tpu_custom_call.1} parent=1 // pred_check_branch
      %15 = sbr.rel (0) target = $region13
    $region12: #{tpu_custom_call.1} parent=1 // pred_region
      _
    $region13: #{tpu_custom_call.1} parent=1 // pred_fallthru
      _
    // Predicated region
    $region14: #{tpu_custom_call.1} parent=1 // pred_check
      _
    $region15: #{tpu_custom_call.1} parent=1 // pred_check_branch
      %17 = sbr.rel (0) target = $region17
    $region16: #{tpu_custom_call.1} parent=1 // pred_region
      _
    $region17: #{tpu_custom_call.1} parent=1 // pred_fallthru
      _
    %v19 = vld [vmem:[%s0] sm:$0x3]
    %v20 = vpack.c.bf16 %v19, %v19
    %v21 = vld [vmem:[%s1] sm:$0x3]
    %v22 = vld [vmem:[%s3] sm:$0x1]
    %v23 = vlaneseq
    %v24 = vshrl.u32 %v23, 7
    %v25 = vsub.s32 0, %v24
    %v26 = vrot.slane %v22, %v25
    %vm27 = vcmask 31744
    %v29 = vsel %vm27, %v20, 0
    %vm31 = vcmask 1041408
    %v33 = vsel %vm31, %v21, 0
    %35 = vmatprep.subr.bf16.mxu0 0
    %36 = vmatpush1.bf16.msra.mxu0 %v33
    %37 = vmatprep.subr.bf16.mxu0 0
    %38 = vmatpush1.bf16.msra.mxu0 0
    %39 = vmatprep.subr.bf16.mxu0 0
    %40 = vmatpush1.bf16.msra.mxu0 0
    %41 = vmatprep.subr.bf16.mxu0 0
    %42 = vmatpush1.bf16.msra.mxu0 0
    %43 = vmatprep.subr.bf16.mxu0 0
    %44 = vmatpush1.bf16.msra.mxu0 0
    %45 = vmatprep.subr.bf16.mxu0 0
    %46 = vmatpush1.bf16.msra.mxu0 0
    %47 = vmatprep.subr.bf16.mxu0 0
    %48 = vmatpush1.bf16.msra.mxu0 0
    %49 = vmatprep.subr.bf16.mxu0 0
    %50 = vmatpush1.bf16.msra.mxu0 0
    %51 = vmatprep.subr.bf16.mxu0 0
    %52 = vmatpush1.bf16.msra.mxu0 0
    %53 = vmatprep.subr.bf16.mxu0 0
    %54 = vmatpush1.bf16.msra.mxu0 0
    %55 = vmatprep.subr.bf16.mxu0 0
    %56 = vmatpush1.bf16.msra.mxu0 0
    %57 = vmatprep.subr.bf16.mxu0 0
    %58 = vmatpush1.bf16.msra.mxu0 0
    %59 = vmatprep.subr.bf16.mxu0 0
    %60 = vmatpush1.bf16.msra.mxu0 0
    %61 = vmatprep.subr.bf16.mxu0 0
    %62 = vmatpush1.bf16.msra.mxu0 0
    %63 = vmatprep.subr.bf16.mxu0 0
    %64 = vmatpush1.bf16.msra.mxu0 0
    %65 = vmatprep.subr.bf16.mxu0 0
    %66 = vmatpush1.bf16.msra.mxu0 0
    %67 = vmatprep.mubr.bf16.mxu0 0
    %68 = vmatmul.mubr.bf16.gmra.mrb[0].mxu0 %v29
    %v69 = vpop.f32.mrb[0].mxu0
    %v70 = vadd.f32 %v26, %v69
    %v71 = vpop.f32.mrb[0].mxu0
    %v72 = vpop.f32.mrb[0].mxu0
    %v73 = vpop.f32.mrb[0].mxu0
    %74 = vdwg.mxu0
    %v75 = vmax.f32 %v70, 0.0
    %v76 = vpack.c.bf16 %v75, %v75
    %v77 = vld [vmem:[%s2] sm:$0xf]
    %v78 = vld [vmem:[%s2 + $0x8] sm:$0xf]
    %v79 = vld [vmem:[%s2 + $0x10] sm:$0xf]
    %v80 = vld [vmem:[%s2 + $0x18] sm:$0xf]
    %v81 = vld [vmem:[%s2 + $0x20] sm:$0xf]
    %v82 = vld [vmem:[%s2 + $0x28] sm:$0xf]
    %v83 = vld [vmem:[%s2 + $0x30] sm:$0xf]
    %v84 = vld [vmem:[%s2 + $0x38] sm:$0xf]
    %v85 = vld [vmem:[%s2 + $0x40] sm:$0xf]
    %v86 = vld [vmem:[%s2 + $0x48] sm:$0xf]
    %v87 = vld [vmem:[%s2 + $0x50] sm:$0xf]
    %v88 = vld [vmem:[%s2 + $0x58] sm:$0xf]
    %v89 = vld [vmem:[%s2 + $0x60] sm:$0xf]
    %v90 = vld [vmem:[%s2 + $0x68] sm:$0xf]
    %v91 = vld [vmem:[%s2 + $0x70] sm:$0xf]
    %v92 = vld [vmem:[%s2 + $0x78] sm:$0xf]
    %v93 = vld [vmem:[%s3 + $0x1] sm:$0x1]
    %v94 = vlaneseq
    %v95 = vshrl.u32 %v94, 7
    %v96 = vsub.s32 0, %v95
    %v97 = vrot.slane %v93, %v96
    %v114 = vunpack.c.l.b16 %v77
    %v115 = vunpack.c.l.b16 %v78
    %v116 = vunpack.c.l.b16 %v79
    %v117 = vunpack.c.l.b16 %v80
    %v118 = vunpack.c.l.b16 %v81
    %v119 = vunpack.c.l.b16 %v82
    %v120 = vunpack.c.l.b16 %v83
    %v121 = vunpack.c.l.b16 %v84
    %v122 = vunpack.c.l.b16 %v85
    %v123 = vunpack.c.l.b16 %v86
    %v124 = vunpack.c.l.b16 %v87
    %v125 = vunpack.c.l.b16 %v88
    %v126 = vunpack.c.l.b16 %v89
    %v127 = vunpack.c.l.b16 %v90
    %v128 = vunpack.c.l.b16 %v91
    %v129 = vunpack.c.l.b16 %v92
    %v130 = vpack.c.b16 %v115, %v114
    %v131 = vpack.c.b16 %v117, %v116
    %v132 = vpack.c.b16 %v119, %v118
    %v133 = vpack.c.b16 %v121, %v120
    %v134 = vpack.c.b16 %v123, %v122
    %v135 = vpack.c.b16 %v125, %v124
    %v136 = vpack.c.b16 %v127, %v126
    %v137 = vpack.c.b16 %v129, %v128
    %146 = vmatprep.subr.bf16.mxu0 0
    %147 = vmatpush1.bf16.msra.mxu0 %v130
    %148 = vmatprep.subr.bf16.mxu0 0
    %149 = vmatpush1.bf16.msra.mxu0 %v131
    %150 = vmatprep.subr.bf16.mxu0 0
    %151 = vmatpush1.bf16.msra.mxu0 %v132
    %152 = vmatprep.subr.bf16.mxu0 0
    %153 = vmatpush1.bf16.msra.mxu0 %v133
    %154 = vmatprep.subr.bf16.mxu0 0
    %155 = vmatpush1.bf16.msra.mxu0 %v134
    %156 = vmatprep.subr.bf16.mxu0 0
    %157 = vmatpush1.bf16.msra.mxu0 %v135
    %158 = vmatprep.subr.bf16.mxu0 0
    %159 = vmatpush1.bf16.msra.mxu0 %v136
    %160 = vmatprep.subr.bf16.mxu0 0
    %161 = vmatpush1.bf16.msra.mxu0 %v137
    %162 = vmatprep.subr.bf16.mxu0 0
    %163 = vmatpush1.bf16.msra.mxu0 0
    %164 = vmatprep.subr.bf16.mxu0 0
    %165 = vmatpush1.bf16.msra.mxu0 0
    %166 = vmatprep.subr.bf16.mxu0 0
    %167 = vmatpush1.bf16.msra.mxu0 0
    %168 = vmatprep.subr.bf16.mxu0 0
    %169 = vmatpush1.bf16.msra.mxu0 0
    %170 = vmatprep.subr.bf16.mxu0 0
    %171 = vmatpush1.bf16.msra.mxu0 0
    %172 = vmatprep.subr.bf16.mxu0 0
    %173 = vmatpush1.bf16.msra.mxu0 0
    %174 = vmatprep.subr.bf16.mxu0 0
    %175 = vmatpush1.bf16.msra.mxu0 0
    %176 = vmatprep.subr.bf16.mxu0 0
    %177 = vmatpush1.bf16.msra.mxu0 0
    %178 = vmatprep.mubr.bf16.mxu0 0
    %179 = vmatmul.mubr.bf16.gmra.mrb[0].mxu0 %v76
    %v180 = vpop.f32.mrb[0].mxu0
    %v181 = vadd.f32 %v97, %v180
    %v182 = vpop.f32.mrb[0].mxu0
    %v183 = vpop.f32.mrb[0].mxu0
    %v184 = vpop.f32.mrb[0].mxu0
    %185 = vdwg.mxu0
    %v186 = vmax.f32 %v181, 0.0
    %v187 = vpack.c.bf16 %v186, %v186
    %v188 = vld [vmem:[%s2 + $0x4] sm:$0xf]
    %v189 = vld [vmem:[%s2 + $0xc] sm:$0xf]
    %v190 = vld [vmem:[%s2 + $0x14] sm:$0xf]
    %v191 = vld [vmem:[%s2 + $0x1c] sm:$0xf]
    %v192 = vld [vmem:[%s2 + $0x24] sm:$0xf]
    %v193 = vld [vmem:[%s2 + $0x2c] sm:$0xf]
    %v194 = vld [vmem:[%s2 + $0x34] sm:$0xf]
    %v195 = vld [vmem:[%s2 + $0x3c] sm:$0xf]
    %v196 = vld [vmem:[%s2 + $0x44] sm:$0xf]
    %v197 = vld [vmem:[%s2 + $0x4c] sm:$0xf]
    %v198 = vld [vmem:[%s2 + $0x54] sm:$0xf]
    %v199 = vld [vmem:[%s2 + $0x5c] sm:$0xf]
    %v200 = vld [vmem:[%s2 + $0x64] sm:$0xf]
    %v201 = vld [vmem:[%s2 + $0x6c] sm:$0xf]
    %v202 = vld [vmem:[%s2 + $0x74] sm:$0xf]
    %v203 = vld [vmem:[%s2 + $0x7c] sm:$0xf]
    %v204 = vld [vmem:[%s3 + $0x2] sm:$0x1]
    %v205 = vlaneseq
    %v206 = vshrl.u32 %v205, 7
    %v207 = vsub.s32 0, %v206
    %v208 = vrot.slane %v204, %v207
    %v225 = vunpack.c.l.b16 %v188
    %v226 = vunpack.c.l.b16 %v189
    %v227 = vunpack.c.l.b16 %v190
    %v228 = vunpack.c.l.b16 %v191
    %v229 = vunpack.c.l.b16 %v192
    %v230 = vunpack.c.l.b16 %v193
    %v231 = vunpack.c.l.b16 %v194
    %v232 = vunpack.c.l.b16 %v195
    %v233 = vunpack.c.l.b16 %v196
    %v234 = vunpack.c.l.b16 %v197
    %v235 = vunpack.c.l.b16 %v198
    %v236 = vunpack.c.l.b16 %v199
    %v237 = vunpack.c.l.b16 %v200
    %v238 = vunpack.c.l.b16 %v201
    %v239 = vunpack.c.l.b16 %v202
    %v240 = vunpack.c.l.b16 %v203
    %v241 = vpack.c.b16 %v226, %v225
    %v242 = vpack.c.b16 %v228, %v227
    %v243 = vpack.c.b16 %v230, %v229
    %v244 = vpack.c.b16 %v232, %v231
    %v245 = vpack.c.b16 %v234, %v233
    %v246 = vpack.c.b16 %v236, %v235
    %v247 = vpack.c.b16 %v238, %v237
    %v248 = vpack.c.b16 %v240, %v239
    %257 = vmatprep.subr.bf16.mxu0 0
    %258 = vmatpush1.bf16.msra.mxu0 %v241
    %259 = vmatprep.subr.bf16.mxu0 0
    %260 = vmatpush1.bf16.msra.mxu0 %v242
    %261 = vmatprep.subr.bf16.mxu0 0
    %262 = vmatpush1.bf16.msra.mxu0 %v243
    %263 = vmatprep.subr.bf16.mxu0 0
    %264 = vmatpush1.bf16.msra.mxu0 %v244
    %265 = vmatprep.subr.bf16.mxu0 0
    %266 = vmatpush1.bf16.msra.mxu0 %v245
    %267 = vmatprep.subr.bf16.mxu0 0
    %268 = vmatpush1.bf16.msra.mxu0 %v246
    %269 = vmatprep.subr.bf16.mxu0 0
    %270 = vmatpush1.bf16.msra.mxu0 %v247
    %271 = vmatprep.subr.bf16.mxu0 0
    %272 = vmatpush1.bf16.msra.mxu0 %v248
    %273 = vmatprep.subr.bf16.mxu0 0
    %274 = vmatpush1.bf16.msra.mxu0 0
    %275 = vmatprep.subr.bf16.mxu0 0
    %276 = vmatpush1.bf16.msra.mxu0 0
    %277 = vmatprep.subr.bf16.mxu0 0
    %278 = vmatpush1.bf16.msra.mxu0 0
    %279 = vmatprep.subr.bf16.mxu0 0
    %280 = vmatpush1.bf16.msra.mxu0 0
    %281 = vmatprep.subr.bf16.mxu0 0
    %282 = vmatpush1.bf16.msra.mxu0 0
    %283 = vmatprep.subr.bf16.mxu0 0
    %284 = vmatpush1.bf16.msra.mxu0 0
    %285 = vmatprep.subr.bf16.mxu0 0
    %286 = vmatpush1.bf16.msra.mxu0 0
    %287 = vmatprep.subr.bf16.mxu0 0
    %288 = vmatpush1.bf16.msra.mxu0 0
    %289 = vmatprep.mubr.bf16.mxu0 0
    %290 = vmatmul.mubr.bf16.gmra.mrb[0].mxu0 %v187
    %v291 = vpop.f32.mrb[0].mxu0
    %v292 = vadd.f32 %v208, %v291
    %v293 = vpop.f32.mrb[0].mxu0
    %v294 = vpop.f32.mrb[0].mxu0
    %v295 = vpop.f32.mrb[0].mxu0
    %296 = vdwg.mxu0
    %vm297 = vcmask 33792
    %298 = vst.msk [vmem:[#allocation2] sm:$0x3] %vm297, %v292
    // Predicated region
    $region18: #{tpu_custom_call.1} parent=1 // pred_check
      _
    $region19: #{tpu_custom_call.1} parent=1 // pred_check_branch
      %300 = sbr.rel (0) target = $region21
    $region20: #{tpu_custom_call.1} parent=1 // pred_region
      %s302 = ssub.s32 32, 32
      %303 = vsyncadd [#allocation3], %s302
      %s305 = sshll.u32 [#allocation2], 4
      %s306 = int_to_ptr.vmem [resolvable:$true] %s305
      %308 = dma.vmem_to_hbm [thread:$0]  %s306, 32, %s4, [#allocation3]
    $region21: #{tpu_custom_call.1} parent=1 // pred_fallthru
      _
    // Predicated region
    $region22: #{tpu_custom_call.1} parent=1 // pred_check
      _
    $region23: #{tpu_custom_call.1} parent=1 // pred_check_branch
      %310 = sbr.rel (0) target = $region25
    $region24: #{tpu_custom_call.1} parent=1 // pred_region
      %311 = dma.done [#allocation3], 32
    $region25: #{tpu_custom_call.1} parent=1 // pred_fallthru
      _
    %312 = vsyncpa [#allocation3], 1

</llo_original>
